<compile_context>
chip_gen: v7x
topology: tpu7x:2x2x1
jax: 0.10.0
libtpu: 0.0.40
codegen_flags: <defaults>
</compile_context>

<pallas_src>
import jax
import jax.numpy as jnp
from jax import lax
from jax.experimental import pallas as pl
from jax.experimental.pallas import tpu as pltpu


_VMEM_LIMIT_BYTES = 48 * 1024 * 1024   # explicit scoped-VMEM cap, safe on v5e/v6e/v7x


# ----------------------------------------------------------------------------
# Small helpers
# ----------------------------------------------------------------------------
def _round_up(x, m):
    return ((x + m - 1) // m) * m


def _pad_axis(x, axis, multiple):
    pad = (-x.shape[axis]) % multiple
    if pad:
        widths = [(0, 0)] * x.ndim
        widths[axis] = (0, pad)
        x = jnp.pad(x, widths)
    return x


def _rotate_half_heads(x, n_heads, head_dim):
    """rotate_half applied independently to each head's lane segment (2-D input)."""
    half = head_dim // 2
    parts = []
    for h in range(n_heads):
        seg = x[:, h * head_dim:(h + 1) * head_dim]
        parts.append(jnp.concatenate([-seg[:, half:], seg[:, :half]], axis=-1))
    return jnp.concatenate(parts, axis=-1)


# ----------------------------------------------------------------------------
# Pallas kernels
# ----------------------------------------------------------------------------
def _make_ln_q_rope_kernel(n_heads, head_dim):
    """Fused LayerNorm + q projection (bf16 MXU operands) + RoPE(q) epilogue."""

    def kernel(x_ref, g_ref, b_ref, wq_ref, cos_ref, sin_ref, o_ref):
        x = x_ref[...].astype(jnp.float32)
        mean = jnp.mean(x, axis=-1, keepdims=True)
        var = jnp.mean((x - mean) ** 2, axis=-1, keepdims=True)
        xn = (x - mean) * lax.rsqrt(var + 1e-5)
        xn = xn * g_ref[...] + b_ref[...]
        q = jnp.dot(xn.astype(jnp.bfloat16), wq_ref[...],
                    preferred_element_type=jnp.float32)
        o_ref[...] = (q * cos_ref[...]
                      + _rotate_half_heads(q, n_heads, head_dim) * sin_ref[...])

    return kernel


def _make_fused_attn_kernel(nq, kp, d_model, n_heads):
    """Fused kv projection + RoPE(k) + masked softmax attention + out_proj + residual.

    Per query block of `nq` queries with `kp` (padded) neighborhood keys each:
      q_ref:     (nq, d_model)        RoPE'd queries
      feats_ref: (nq*kp, d_model)     gathered neighborhood features (flattened)
      mask_ref:  (nq, kp)             key validity {0,1}
      cosk/sink: (nq*kp, d_model)     per-head-tiled RoPE tables for keys
      wkv_ref:   (d_model, 2*d_model) kv projection weight (bf16)
      wout_ref:  (d_model, d_model)   out projection weight (bf16)
      res_ref:   (nq, d_model)        residual (pre-norm input)
      o_ref:     (nq, d_model)
    """
    dh = d_model // n_heads

    def kernel(q_ref, feats_ref, mask_ref, cosk_ref, sink_ref,
               wkv_ref, wout_ref, res_ref, o_ref):
        # kv projection on the MXU (bf16 operands, f32 accumulation).
        kv = jnp.dot(feats_ref[...].astype(jnp.bfloat16), wkv_ref[...],
                     preferred_element_type=jnp.float32)            # (nq*kp, 2d)
        k = kv[:, :d_model]
        v = kv[:, d_model:]
        # RoPE on k (cos/sin pre-tiled per head -> lane dim stays d_model).
        k = k * cosk_ref[...] + _rotate_half_heads(k, n_heads, dh) * sink_ref[...]
        # kp is a multiple of 8, so these reshapes are tile-aligned (no relayout).
        k3 = k.reshape(nq, kp, d_model)
        v3 = v.reshape(nq, kp, d_model)
        q = q_ref[...]                                              # (nq, d)
        t3 = k3 * q[:, None, :]                                     # (nq, kp, d)
        # Per-head scores: reduce each head's dh-wide lane group -> (nq, kp, H).
        scores = jnp.concatenate(
            [jnp.sum(t3[:, :, h * dh:(h + 1) * dh], axis=-1, keepdims=True)
             for h in range(n_heads)], axis=-1)
        # NOTE: the reference PyTorch module applies NO 1/sqrt(head_dim) scaling
        # (manual einsum + softmax), so none is applied here either.
        mask3 = (mask_ref[...] > 0.5)[:, :, None]                   # (nq, kp, 1)
        s = jnp.where(mask3, scores, jnp.float32(-1e30))            # f32 softmax path
        m = jnp.max(s, axis=1, keepdims=True)                       # (nq, 1, H)
        p = jnp.where(mask3, jnp.exp(s - m), 0.0)                   # (nq, kp, H)
        denom = jnp.sum(p, axis=1, keepdims=True)                   # (nq, 1, H)
        # EUP approx reciprocal; the denom>0 guard reproduces softmax->nan_to_num(0)
        # for fully-masked (and row-padded) queries.
        inv = jnp.where(denom > 0.0, pl.reciprocal(denom, approx=True), 0.0)
        w = p * inv                                                 # (nq, kp, H)
        # Expand per-head weights back to the lane-dense d_model layout.
        w_exp = jnp.concatenate(
            [jnp.broadcast_to(w[:, :, h:h + 1], (nq, kp, dh)) for h in range(n_heads)],
            axis=-1)                                                # (nq, kp, d)
        attn = jnp.sum(w_exp * v3, axis=1)                          # (nq, d)
        # Out projection (bf16 MXU) fused with the residual add (dropout rate = 0).
        o_ref[...] = (jnp.dot(attn.astype(jnp.bfloat16), wout_ref[...],
                              preferred_element_type=jnp.float32)
                      + res_ref[...].astype(jnp.float32))

    return kernel


# ----------------------------------------------------------------------------
# Pallas wrappers
# ----------------------------------------------------------------------------
def pallas_ln_q_rope(x, gamma, beta, wq_t, cos_q, sin_q, n_heads, block_rows=512):
    """LayerNorm + q projection + RoPE(q).  x: (N, D); cos/sin: (N, D) per-head tiled."""
    M, D = x.shape
    dh = D // n_heads
    # Large row blocks amortize the per-grid-step pipeline overhead; keep >=2 grid
    # steps on large inputs so the "parallel" axis can shard over v7x's 2 TCs.
    br = _round_up(min(block_rows, _round_up(M, 8)), 8)
    xp = _pad_axis(x, 0, br)
    cp = _pad_axis(cos_q, 0, br)
    sp = _pad_axis(sin_q, 0, br)
    Mp = xp.shape[0]
    g = gamma.reshape(1, D).astype(jnp.float32)
    b = beta.reshape(1, D).astype(jnp.float32)
    out = pl.pallas_call(
        _make_ln_q_rope_kernel(n_heads, dh),
        out_shape=jax.ShapeDtypeStruct((Mp, D), jnp.float32),
        grid=(Mp // br,),
        in_specs=[pl.BlockSpec((br, D), lambda i: (i, 0)),
                  pl.BlockSpec((1, D), lambda i: (0, 0)),
                  pl.BlockSpec((1, D), lambda i: (0, 0)),
                  pl.BlockSpec((D, D), lambda i: (0, 0)),
                  pl.BlockSpec((br, D), lambda i: (i, 0)),
                  pl.BlockSpec((br, D), lambda i: (i, 0))],
        out_specs=pl.BlockSpec((br, D), lambda i: (i, 0)),
        compiler_params=pltpu.CompilerParams(
            dimension_semantics=("parallel",),
            vmem_limit_bytes=_VMEM_LIMIT_BYTES),
    )(xp, g, b, wq_t.astype(jnp.bfloat16), cp, sp)
    return out[:M]


def pallas_fused_attention(q, feats, mask, cos_k, sin_k, wkv_t, wout_t, residual,
                           n_heads, queries_per_block=64):
    """q/residual: (N, D); feats/cos_k/sin_k: (N, K, D); mask: (N, K) float -> (N, D).

    queries_per_block=64 keeps 2x-buffered inputs + lane-padded intermediates well
    under v7x's 64 MiB VMEM while each grid step still moves multiple MB.
    """
    N, D = q.shape
    K = feats.shape[1]
    Kp = _round_up(K, 8)                 # padded keys (extra slots fully masked)
    Nb = _round_up(min(queries_per_block, _round_up(N, 8)), 8)

    feats = _pad_axis(feats, 1, 8)
    cos_k = _pad_axis(cos_k, 1, 8)
    sin_k = _pad_axis(sin_k, 1, 8)
    mask = _pad_axis(mask, 1, 8)

    q = _pad_axis(q, 0, Nb)
    residual = _pad_axis(residual, 0, Nb)
    mask = _pad_axis(mask, 0, Nb)
    feats = _pad_axis(feats, 0, Nb)
    cos_k = _pad_axis(cos_k, 0, Nb)
    sin_k = _pad_axis(sin_k, 0, Nb)
    Np = q.shape[0]

    # Flatten (N, Kp, D) -> (N*Kp, D): lane-dense 2-D blocks, no sublane padding waste.
    featsf = feats.reshape(Np * Kp, D)
    coskf = cos_k.reshape(Np * Kp, D)
    sinkf = sin_k.reshape(Np * Kp, D)

    out = pl.pallas_call(
        _make_fused_attn_kernel(Nb, Kp, D, n_heads),
        out_shape=jax.ShapeDtypeStruct((Np, D), jnp.float32),
        grid=(Np // Nb,),
        in_specs=[pl.BlockSpec((Nb, D), lambda i: (i, 0)),
                  pl.BlockSpec((Nb * Kp, D), lambda i: (i, 0)),
                  pl.BlockSpec((Nb, Kp), lambda i: (i, 0)),
                  pl.BlockSpec((Nb * Kp, D), lambda i: (i, 0)),
                  pl.BlockSpec((Nb * Kp, D), lambda i: (i, 0)),
                  pl.BlockSpec((D, 2 * D), lambda i: (0, 0)),
                  pl.BlockSpec((D, D), lambda i: (0, 0)),
                  pl.BlockSpec((Nb, D), lambda i: (i, 0))],
        out_specs=pl.BlockSpec((Nb, D), lambda i: (i, 0)),
        compiler_params=pltpu.CompilerParams(
            dimension_semantics=("parallel",),
            vmem_limit_bytes=_VMEM_LIMIT_BYTES),
    )(q, featsf, mask, coskf, sinkf,
      wkv_t.astype(jnp.bfloat16), wout_t.astype(jnp.bfloat16), residual)
    return out[:N]


# ----------------------------------------------------------------------------
# Plain-JAX glue (index math, gather, RoPE prep) — faithful ports
# ----------------------------------------------------------------------------
def get_multilevel_neighborhood(bijl_positions, level_spatial_shapes, neighborhood_sizes):
    """JAX port of the reference torch function. Returns (N, K, 4) int32 bijl indices."""
    assert all(s % 2 == 1 for s in neighborhood_sizes)
    n_queries = bijl_positions.shape[0]
    lvl_shapes = level_spatial_shapes.astype(jnp.float32)                 # (L, 2)
    spatial_scalings = lvl_shapes / lvl_shapes[-1]                        # (L, 2)
    q_levels = bijl_positions[:, -1].astype(jnp.int32)
    q_spatial_scalings = spatial_scalings[q_levels]                       # (N, 2)
    q_fullscale_ij = bijl_positions[:, 1:3] * q_spatial_scalings          # (N, 2)
    q_multilevel_ij = q_fullscale_ij[:, None, :] * spatial_scalings[None] # (N, L, 2)

    chunks = []
    for lvl, size in enumerate(neighborhood_sizes):
        oi, oj = jnp.meshgrid(jnp.arange(size, dtype=jnp.int32),
                              jnp.arange(size, dtype=jnp.int32), indexing="ij")
        offsets = jnp.stack([oi, oj], axis=-1) - (size - 1) // 2          # (s, s, 2)
        center = jnp.floor(q_multilevel_ij[:, lvl]).astype(jnp.int32)     # (N, 2)
        nh = center[:, None, None, :] + offsets[None]                     # (N, s, s, 2)
        lvl_col = jnp.full(nh.shape[:-1] + (1,), lvl, dtype=jnp.int32)
        nh = jnp.concatenate([nh, lvl_col], axis=-1)                      # (N, s, s, 3)
        chunks.append(nh.reshape(n_queries, -1, 3))
    ijl = jnp.concatenate(chunks, axis=1)                                 # (N, K, 3)
    b = jnp.broadcast_to(bijl_positions[:, 0].astype(jnp.int32)[:, None, None],
                         (n_queries, ijl.shape[1], 1))
    return jnp.concatenate([b, ijl], axis=-1)                             # (N, K, 4)


def gather_features(stacked_feature_maps, value_bijl, level_spatial_shapes):
    """Dense stand-in for batch_sparse_index_(linear) gather: returns feats + validity."""
    B, Hm, Wm, L, C = stacked_feature_maps.shape
    b = value_bijl[..., 0]
    i = value_bijl[..., 1]
    j = value_bijl[..., 2]
    l = value_bijl[..., 3]
    shapes = level_spatial_shapes[jnp.clip(l, 0, L - 1)]                  # (N, K, 2)
    valid = ((b >= 0) & (b < B) & (l >= 0) & (l < L)
             & (i >= 0) & (i < shapes[..., 0])
             & (j >= 0) & (j < shapes[..., 1]))
    bi = jnp.clip(b, 0, B - 1)
    ii = jnp.clip(i, 0, Hm - 1)
    jj = jnp.clip(j, 0, Wm - 1)
    ll = jnp.clip(l, 0, L - 1)
    feats = stacked_feature_maps[bi, ii, jj, ll]                          # (N, K, C)
    feats = jnp.where(valid[..., None], feats, 0.0)
    return feats, valid


def prep_multilevel_positions(bijl, level_spatial_shapes):
    # TODO(synk): emsim's prep_multilevel_positions source was not provided; this
    # rescales pixel-center ij to the last level's frame and appends the level idx.
    L = level_spatial_shapes.shape[0]
    lvl = bijl[..., 3].astype(jnp.int32)
    shapes = level_spatial_shapes[jnp.clip(lvl, 0, L - 1)].astype(jnp.float32)
    full = level_spatial_shapes[-1].astype(jnp.float32)
    ij = bijl[..., 1:3].astype(jnp.float32)
    ij_scaled = (ij + 0.5) * (full / shapes)
    return jnp.concatenate([bijl[..., :1].astype(jnp.float32), ij_scaled,
                            lvl[..., None].astype(jnp.float32)], axis=-1)


def make_rope_cos_sin(positions, head_dim, thetas):
    # TODO(synk): RoPEEncodingNDGroupedFreqs source not provided; this is a grouped
    # N-D RoPE (spatial dims share rope_theta, level dim uses rope_theta/100).
    P = positions.shape[-1]
    n_pairs = head_dim // 2
    base = n_pairs // P
    counts = [base + (1 if i < n_pairs % P else 0) for i in range(P)]
    chunks = []
    for p in range(P):
        c = counts[p]
        freqs = jnp.asarray(thetas[p], jnp.float32) ** (
            -jnp.arange(c, dtype=jnp.float32) / max(c, 1))
        chunks.append(positions[..., p:p + 1].astype(jnp.float32) * freqs)
    angles = jnp.concatenate(chunks, axis=-1)                             # (..., head_dim/2)
    cos = jnp.concatenate([jnp.cos(angles), jnp.cos(angles)], axis=-1)
    sin = jnp.concatenate([jnp.sin(angles), jnp.sin(angles)], axis=-1)
    return cos, sin


def _rotate_half(x):
    d = x.shape[-1] // 2
    return jnp.concatenate([-x[..., d:], x[..., :d]], axis=-1)


def apply_rope(x, cos, sin):
    return x * cos + _rotate_half(x) * sin


def prepare_inputs(query_positions_bijl, stacked_feature_maps, level_spatial_shapes,
                   neighborhood_sizes, head_dim, rope_theta):
    n_queries = query_positions_bijl.shape[0]
    value_bijl = get_multilevel_neighborhood(query_positions_bijl, level_spatial_shapes,
                                             neighborhood_sizes)
    K = int(sum(s * s for s in neighborhood_sizes))
    feats, valid = gather_features(stacked_feature_maps, value_bijl, level_spatial_shapes)

    query_ijl = prep_multilevel_positions(query_positions_bijl, level_spatial_shapes)[:, 1:]
    key_ijl = prep_multilevel_positions(value_bijl.astype(jnp.float32).reshape(-1, 4),
                                        level_spatial_shapes).reshape(n_queries, K, 4)[..., 1:]
    thetas = [rope_theta, rope_theta, rope_theta / 100.0]
    cos_q, sin_q = make_rope_cos_sin(query_ijl, head_dim, thetas)          # (N, Dh)
    cos_k, sin_k = make_rope_cos_sin(key_ijl, head_dim, thetas)            # (N, K, Dh)
    return feats, valid, cos_q, sin_q, cos_k, sin_k


# ----------------------------------------------------------------------------
# Forward passes
# ----------------------------------------------------------------------------
def pallas_forward(params, query, feats, valid, cos_q, sin_q, cos_k, sin_k, n_heads,
                   block_rows=512, queries_per_block=64):
    H = n_heads
    # Stage 1: fused LayerNorm + q_in_proj + RoPE(q)  (one Pallas kernel).
    cos_qf = jnp.tile(cos_q.astype(jnp.float32), (1, H))                   # (N, D)
    sin_qf = jnp.tile(sin_q.astype(jnp.float32), (1, H))
    q = pallas_ln_q_rope(query, params["norm_weight"], params["norm_bias"],
                         params["q_proj_w"].T, cos_qf, sin_qf, H,
                         block_rows=block_rows)
    # Stage 2: fused kv_in_proj + RoPE(k) + masked softmax attention
    #          + out_proj + residual  (one Pallas kernel).  Dropout rates are 0.
    cos_kf = jnp.tile(cos_k.astype(jnp.float32), (1, 1, H))                # (N, K, D)
    sin_kf = jnp.tile(sin_k.astype(jnp.float32), (1, 1, H))
    return pallas_fused_attention(q, feats, valid.astype(jnp.float32),
                                  cos_kf, sin_kf,
                                  params["kv_proj_w"].T, params["out_proj_w"].T,
                                  query, H, queries_per_block=queries_per_block)


def reference_compute(params, query, feats, valid, cos_q, sin_q, cos_k, sin_k, n_heads):
    """Pure-JAX reference.  Matmul operands are cast to bf16 (f32 accumulation) to
    mirror the kernels' MXU precision; everything else runs at f32/HIGHEST."""
    hp = lax.Precision.HIGHEST

    def mm(a, b):
        return jnp.dot(a.astype(jnp.bfloat16), b.astype(jnp.bfloat16),
                       preferred_element_type=jnp.float32)

    N, D = query.shape
    K = feats.shape[1]
    H = n_heads
    Dh = D // H
    mean = jnp.mean(query, -1, keepdims=True)
    var = jnp.mean((query - mean) ** 2, -1, keepdims=True)
    xn = (query - mean) / jnp.sqrt(var + 1e-5) * params["norm_weight"] + params["norm_bias"]
    q = mm(xn, params["q_proj_w"].T)
    kv = mm(feats.reshape(N * K, D), params["kv_proj_w"].T).reshape(N, K, 2 * D)
    k, v = kv[..., :D], kv[..., D:]
    qh = apply_rope(q.reshape(N, H, Dh), cos_q[:, None, :], sin_q[:, None, :])
    kh = apply_rope(k.reshape(N, K, H, Dh), cos_k[:, :, None, :], sin_k[:, :, None, :])
    vh = v.reshape(N, K, H, Dh)
    scores = jnp.einsum("nhd,nkhd->nhk", qh, kh, precision=hp)
    scores = jnp.where(valid[:, None, :], scores, -jnp.inf)
    w = jnp.nan_to_num(jax.nn.softmax(scores, axis=-1), nan=0.0)
    out = jnp.einsum("nhk,nkhd->nhd", w, vh, precision=hp).reshape(N, D)
    return mm(out, params["out_proj_w"].T) + query


def sparse_neighborhood_attention_block(params, query, query_positions_bijl,
                                        query_batch_offsets, stacked_feature_maps,
                                        level_spatial_shapes, *, n_heads,
                                        neighborhood_sizes, rope_theta=10.0):
    # query_batch_offsets is accepted for interface parity; the reference's
    # deconcat/re-concat padded batching is a layout no-op for per-query attention.
    del query_batch_offsets
    prep = prepare_inputs(query_positions_bijl, stacked_feature_maps,
                          level_spatial_shapes, neighborhood_sizes,
                          query.shape[1] // n_heads, rope_theta)
    return pallas_forward(params, query, *prep, n_heads=n_heads)


# ----------------------------------------------------------------------------
if __name__ == "__main__":
    d_model, n_heads = 32, 4
    n_levels = 2
    neighborhood_sizes = [3, 5]            # keys_per_query = 9 + 25 = 34
    rope_theta = 10.0

    key = jax.random.PRNGKey(0)
    ks = jax.random.split(key, 8)
    scale = 1.0 / jnp.sqrt(d_model)
    params = {
        "norm_weight": 1.0 + 0.1 * jax.random.normal(ks[0], (d_model,), jnp.float32),
        "norm_bias": 0.1 * jax.random.normal(ks[1], (d_model,), jnp.float32),
        "q_proj_w": scale * jax.random.normal(ks[2], (d_model, d_model), jnp.float32),
        "kv_proj_w": scale * jax.random.normal(ks[3], (2 * d_model, d_model), jnp.float32),
        "out_proj_w": scale * jax.random.normal(ks[4], (d_model, d_model), jnp.float32),
    }

    batch = 2
    level_spatial_shapes = jnp.array([[8, 8], [16, 16]], dtype=jnp.int32)
    stacked_feature_maps = jax.random.normal(ks[5], (batch, 16, 16, n_levels, d_model),
                                             jnp.float32)

    n_queries = 8
    query = jax.random.normal(ks[6], (n_queries, d_model), jnp.float32)
    batch_idx = jnp.array([0, 0, 0, 0, 0, 1, 1, 1], dtype=jnp.float32)
    q_levels = jnp.array([0, 1, 0, 1, 0, 1, 0, 1], dtype=jnp.float32)
    shapes_per_q = level_spatial_shapes[q_levels.astype(jnp.int32)].astype(jnp.float32)
    ij = jax.random.uniform(ks[7], (n_queries, 2), jnp.float32) * shapes_per_q
    query_positions_bijl = jnp.concatenate(
        [batch_idx[:, None], ij, q_levels[:, None]], axis=1)
    query_batch_offsets = jnp.array([0, 5, 8], dtype=jnp.int32)

    out = sparse_neighborhood_attention_block(
        params, query, query_positions_bijl, query_batch_offsets,
        stacked_feature_maps, level_spatial_shapes,
        n_heads=n_heads, neighborhood_sizes=neighborhood_sizes, rope_theta=rope_theta)
    out = jax.block_until_ready(out)

    # Pure-JAX reference for the Pallas-implemented compute path.
    prep = prepare_inputs(query_positions_bijl, stacked_feature_maps,
                          level_spatial_shapes, neighborhood_sizes,
                          d_model // n_heads, rope_theta)
    ref = reference_compute(params, query, *prep, n_heads=n_heads)

    assert out.shape == (n_queries, d_model)
    assert bool(jnp.all(jnp.isfinite(out)))
    max_err = float(jnp.max(jnp.abs(out - ref)))
    if max_err > 5e-2:
        raise AssertionError(f"Pallas output mismatch vs reference: max_err={max_err}")
    print("KERNEL_OK")
</pallas_src>

<mosaic_0001>
module attributes {stable_mosaic.version = 11 : i64} {
  func.func @kernel(%arg0: i32, %arg1: memref<8x32xf32, #tpu.memory_space<vmem>>, %arg2: memref<1x32xf32, #tpu.memory_space<vmem>>, %arg3: memref<1x32xf32, #tpu.memory_space<vmem>>, %arg4: memref<32x32xbf16, #tpu.memory_space<vmem>>, %arg5: memref<8x32xf32, #tpu.memory_space<vmem>>, %arg6: memref<8x32xf32, #tpu.memory_space<vmem>>, %arg7: memref<8x32xf32, #tpu.memory_space<vmem>>) attributes {dimension_semantics = [#tpu.dimension_semantics<parallel>], iteration_bounds = array<i64: 1>, scalar_prefetch = 0 : i64, scratch_operands = 0 : i64, tpu.core_type = #tpu.core_type<tc>, window_params = [{transform_indices = @transform_0, window_bounds = array<i64: 8, 32>}, {pipeline_mode = #tpu.pipeline_mode<synchronous>, transform_indices = @transform_1, window_bounds = array<i64: 1, 32>}, {pipeline_mode = #tpu.pipeline_mode<synchronous>, transform_indices = @transform_2, window_bounds = array<i64: 1, 32>}, {pipeline_mode = #tpu.pipeline_mode<synchronous>, transform_indices = @transform_3, window_bounds = array<i64: 32, 32>}, {transform_indices = @transform_4, window_bounds = array<i64: 8, 32>}, {transform_indices = @transform_5, window_bounds = array<i64: 8, 32>}, {transform_indices = @transform_6, window_bounds = array<i64: 8, 32>}]} {
    %c0 = arith.constant 0 : index
    %c0_0 = arith.constant 0 : index
    %0 = vector.load %arg1[%c0, %c0_0] : memref<8x32xf32, #tpu.memory_space<vmem>>, vector<8x32xf32>
    %cst = arith.constant dense<0.000000e+00> : vector<8xf32>
    %1 = vector.multi_reduction <add>, %0, %cst [1] : vector<8x32xf32> to vector<8xf32>
    %2 = vector.shape_cast %1 : vector<8xf32> to vector<8x1xf32>
    %cst_1 = arith.constant 3.200000e+01 : f32
    %3 = vector.broadcast %cst_1 : f32 to vector<8x1xf32>
    %4 = arith.divf %2, %3 : vector<8x1xf32>
    %5 = vector.broadcast %4 : vector<8x1xf32> to vector<8x32xf32>
    %6 = arith.subf %0, %5 : vector<8x32xf32>
    %7 = arith.mulf %6, %6 : vector<8x32xf32>
    %cst_2 = arith.constant dense<0.000000e+00> : vector<8xf32>
    %8 = vector.multi_reduction <add>, %7, %cst_2 [1] : vector<8x32xf32> to vector<8xf32>
    %9 = vector.shape_cast %8 : vector<8xf32> to vector<8x1xf32>
    %cst_3 = arith.constant 3.200000e+01 : f32
    %10 = vector.broadcast %cst_3 : f32 to vector<8x1xf32>
    %11 = arith.divf %9, %10 : vector<8x1xf32>
    %12 = vector.broadcast %4 : vector<8x1xf32> to vector<8x32xf32>
    %13 = arith.subf %0, %12 : vector<8x32xf32>
    %cst_4 = arith.constant 9.99999974E-6 : f32
    %14 = vector.broadcast %cst_4 : f32 to vector<8x1xf32>
    %15 = arith.addf %11, %14 : vector<8x1xf32>
    %16 = math.rsqrt %15 : vector<8x1xf32>
    %17 = vector.broadcast %16 : vector<8x1xf32> to vector<8x32xf32>
    %18 = arith.mulf %13, %17 : vector<8x32xf32>
    %c0_5 = arith.constant 0 : index
    %c0_6 = arith.constant 0 : index
    %19 = vector.load %arg2[%c0_5, %c0_6] : memref<1x32xf32, #tpu.memory_space<vmem>>, vector<1x32xf32>
    %20 = vector.broadcast %19 : vector<1x32xf32> to vector<8x32xf32>
    %21 = arith.mulf %18, %20 : vector<8x32xf32>
    %c0_7 = arith.constant 0 : index
    %c0_8 = arith.constant 0 : index
    %22 = vector.load %arg3[%c0_7, %c0_8] : memref<1x32xf32, #tpu.memory_space<vmem>>, vector<1x32xf32>
    %23 = vector.broadcast %22 : vector<1x32xf32> to vector<8x32xf32>
    %24 = arith.addf %21, %23 : vector<8x32xf32>
    %25 = arith.truncf %24 : vector<8x32xf32> to vector<8x32xbf16>
    %c0_9 = arith.constant 0 : index
    %c0_10 = arith.constant 0 : index
    %26 = vector.load %arg4[%c0_9, %c0_10] : memref<32x32xbf16, #tpu.memory_space<vmem>>, vector<32x32xbf16>
    %cst_11 = arith.constant dense<0.000000e+00> : vector<8x32xf32>
    %27 = tpu.matmul %25, %26, %cst_11 {dimension_numbers = #tpu.dot_dimension_numbers<[1], [0], [0], [1], [0, 0, 1, 1], [], []>} : vector<8x32xbf16>, vector<32x32xbf16>, vector<8x32xf32> -> vector<8x32xf32>
    %c0_12 = arith.constant 0 : index
    %c0_13 = arith.constant 0 : index
    %28 = vector.load %arg5[%c0_12, %c0_13] : memref<8x32xf32, #tpu.memory_space<vmem>>, vector<8x32xf32>
    %29 = arith.mulf %27, %28 : vector<8x32xf32>
    %30 = vector.extract_strided_slice %27 {offsets = [0, 0], sizes = [8, 8], strides = [1, 1]} : vector<8x32xf32> to vector<8x8xf32>
    %31 = vector.extract_strided_slice %30 {offsets = [0, 4], sizes = [8, 4], strides = [1, 1]} : vector<8x8xf32> to vector<8x4xf32>
    %cst_14 = arith.constant 0.000000e+00 : f32
    %32 = vector.broadcast %cst_14 : f32 to vector<8x4xf32>
    %33 = arith.subf %32, %31 : vector<8x4xf32>
    %34 = vector.extract_strided_slice %30 {offsets = [0, 0], sizes = [8, 4], strides = [1, 1]} : vector<8x8xf32> to vector<8x4xf32>
    %35 = tpu.concatenate %33, %34 in 1 : vector<8x4xf32>, vector<8x4xf32> -> vector<8x8xf32>
    %36 = vector.extract_strided_slice %27 {offsets = [0, 8], sizes = [8, 8], strides = [1, 1]} : vector<8x32xf32> to vector<8x8xf32>
    %37 = vector.extract_strided_slice %36 {offsets = [0, 4], sizes = [8, 4], strides = [1, 1]} : vector<8x8xf32> to vector<8x4xf32>
    %cst_15 = arith.constant 0.000000e+00 : f32
    %38 = vector.broadcast %cst_15 : f32 to vector<8x4xf32>
    %39 = arith.subf %38, %37 : vector<8x4xf32>
    %40 = vector.extract_strided_slice %36 {offsets = [0, 0], sizes = [8, 4], strides = [1, 1]} : vector<8x8xf32> to vector<8x4xf32>
    %41 = tpu.concatenate %39, %40 in 1 : vector<8x4xf32>, vector<8x4xf32> -> vector<8x8xf32>
    %42 = vector.extract_strided_slice %27 {offsets = [0, 16], sizes = [8, 8], strides = [1, 1]} : vector<8x32xf32> to vector<8x8xf32>
    %43 = vector.extract_strided_slice %42 {offsets = [0, 4], sizes = [8, 4], strides = [1, 1]} : vector<8x8xf32> to vector<8x4xf32>
    %cst_16 = arith.constant 0.000000e+00 : f32
    %44 = vector.broadcast %cst_16 : f32 to vector<8x4xf32>
    %45 = arith.subf %44, %43 : vector<8x4xf32>
    %46 = vector.extract_strided_slice %42 {offsets = [0, 0], sizes = [8, 4], strides = [1, 1]} : vector<8x8xf32> to vector<8x4xf32>
    %47 = tpu.concatenate %45, %46 in 1 : vector<8x4xf32>, vector<8x4xf32> -> vector<8x8xf32>
    %48 = vector.extract_strided_slice %27 {offsets = [0, 24], sizes = [8, 8], strides = [1, 1]} : vector<8x32xf32> to vector<8x8xf32>
    %49 = vector.extract_strided_slice %48 {offsets = [0, 4], sizes = [8, 4], strides = [1, 1]} : vector<8x8xf32> to vector<8x4xf32>
    %cst_17 = arith.constant 0.000000e+00 : f32
    %50 = vector.broadcast %cst_17 : f32 to vector<8x4xf32>
    %51 = arith.subf %50, %49 : vector<8x4xf32>
    %52 = vector.extract_strided_slice %48 {offsets = [0, 0], sizes = [8, 4], strides = [1, 1]} : vector<8x8xf32> to vector<8x4xf32>
    %53 = tpu.concatenate %51, %52 in 1 : vector<8x4xf32>, vector<8x4xf32> -> vector<8x8xf32>
    %54 = tpu.concatenate %35, %41, %47, %53 in 1 : vector<8x8xf32>, vector<8x8xf32>, vector<8x8xf32>, vector<8x8xf32> -> vector<8x32xf32>
    %c0_18 = arith.constant 0 : index
    %c0_19 = arith.constant 0 : index
    %55 = vector.load %arg6[%c0_18, %c0_19] : memref<8x32xf32, #tpu.memory_space<vmem>>, vector<8x32xf32>
    %56 = arith.mulf %54, %55 : vector<8x32xf32>
    %57 = arith.addf %29, %56 : vector<8x32xf32>
    %c0_20 = arith.constant 0 : index
    %c0_21 = arith.constant 0 : index
    %58 = vector.load %arg7[%c0_20, %c0_21] : memref<8x32xf32, #tpu.memory_space<vmem>>, vector<8x32xf32>
    tpu.vector_store %arg7[%c0_20, %c0_21], %57 {strides = array<i32>} : memref<8x32xf32, #tpu.memory_space<vmem>>, vector<8x32xf32>,
    return
  }
  func.func @transform_0(%arg0: i32) -> (i32, i32) {
    %c0_i32 = arith.constant 0 : i32
    %c0_i32_0 = arith.constant 0 : i32
    return %arg0, %c0_i32 : i32, i32
  }
  func.func @transform_1(%arg0: i32) -> (i32, i32) {
    %c0_i32 = arith.constant 0 : i32
    %c0_i32_0 = arith.constant 0 : i32
    %c0_i32_1 = arith.constant 0 : i32
    return %c0_i32, %c0_i32_0 : i32, i32
  }
  func.func @transform_2(%arg0: i32) -> (i32, i32) {
    %c0_i32 = arith.constant 0 : i32
    %c0_i32_0 = arith.constant 0 : i32
    %c0_i32_1 = arith.constant 0 : i32
    return %c0_i32, %c0_i32_0 : i32, i32
  }
  func.func @transform_3(%arg0: i32) -> (i32, i32) {
    %c0_i32 = arith.constant 0 : i32
    %c0_i32_0 = arith.constant 0 : i32
    %c0_i32_1 = arith.constant 0 : i32
    return %c0_i32, %c0_i32_0 : i32, i32
  }
  func.func @transform_4(%arg0: i32) -> (i32, i32) {
    %c0_i32 = arith.constant 0 : i32
    %c0_i32_0 = arith.constant 0 : i32
    return %arg0, %c0_i32 : i32, i32
  }
  func.func @transform_5(%arg0: i32) -> (i32, i32) {
    %c0_i32 = arith.constant 0 : i32
    %c0_i32_0 = arith.constant 0 : i32
    return %arg0, %c0_i32 : i32, i32
  }
  func.func @transform_6(%arg0: i32) -> (i32, i32) {
    %c0_i32 = arith.constant 0 : i32
    %c0_i32_0 = arith.constant 0 : i32
    return %arg0, %c0_i32 : i32, i32
  }
}

</mosaic_0001>

<llo_original>
// kernel: tpu_custom_call.1
$region0: #{tpu_custom_call.1}
  #allocation0 [shape = 'u32[]', space=smem, size = 0x4, offset = 0x4, fixed_abs, tag = 'smem constant byte address 0x4 - core index']
  #allocation1 [shape = 'u32[144,128]{1,0:T(1,128)}', space=vmem, size = 0x12000, scoped, tag = 'internal scratch']
  %s0 = inlined_call_operand.hbm [shape: f32[8,32], index: 0, kind: input, shape index: {}]
  %s1 = inlined_call_operand.vmem [shape: f32[1,32], index: 1, kind: input, shape index: {}]
  %s2 = inlined_call_operand.vmem [shape: f32[1,32], index: 2, kind: input, shape index: {}]
  %s3 = inlined_call_operand.hbm [shape: bf16[32,32], index: 3, kind: input, shape index: {}]
  %s4 = inlined_call_operand.vmem [shape: f32[8,32], index: 4, kind: input, shape index: {}]
  %s5 = inlined_call_operand.vmem [shape: f32[8,32], index: 5, kind: input, shape index: {}]
  %s6 = inlined_call_operand.hbm [shape: f32[8,32], index: 6, kind: output, shape index: {}]
  %s7 = sld [smem:[#allocation0]]
  $region42: #{tpu_custom_call.1} parent=0
    _
  %s9 = ssub.s32 1, %s7
  %s10 = scalar_select 0, %s9, %s7
  $region1: #{tpu_custom_call.1} parent=0
    #allocation2 [shape = 'u8[4096]{0}', space=vmem, size = 0x1000, scoped, tag = 'input window, operand 0, single buffered']
    #allocation3 [shape = 's32[1]{0}', space=sflag, size = 0x4, scoped, tag = 'scoped memory for tpu_custom_call.1']
    #allocation4 [shape = 's32[1]{0}', space=sflag, size = 0x4, scoped, tag = 'scoped memory for tpu_custom_call.1']
    #allocation5 [shape = 'u8[8192]{0}', space=vmem, size = 0x2000, scoped, tag = 'input window, operand 3, single buffered']
    #allocation6 [shape = 's32[1]{0}', space=sflag, size = 0x4, scoped, tag = 'scoped memory for tpu_custom_call.1']
    #allocation7 [shape = 'u8[4096]{0}', space=vmem, size = 0x1000, scoped, tag = 'output window, operand 0, single buffered']
    %11 = vsyncpa [#allocation3], 0
    %12 = vsyncpa [#allocation6], 0
    %13 = vsyncpa [#allocation4], 0
    // Predicated region
    $region2: #{tpu_custom_call.1} parent=1 // pred_check
      _
    $region3: #{tpu_custom_call.1} parent=1 // pred_check_branch
      %15 = sbr.rel (0) target = $region5
    $region4: #{tpu_custom_call.1} parent=1 // pred_region
      %s17 = ssub.s32 128, 128
      %18 = vsyncadd [#allocation3], %s17
      %s20 = sshll.u32 [#allocation2], 4
      %s21 = int_to_ptr.vmem [resolvable:$true] %s20
      %23 = dma.hbm_to_vmem [thread:$0]  %s0, 128, %s21, [#allocation3]
    $region5: #{tpu_custom_call.1} parent=1 // pred_fallthru
      _
    // Predicated region
    $region6: #{tpu_custom_call.1} parent=1 // pred_check
      _
    $region7: #{tpu_custom_call.1} parent=1 // pred_check_branch
      %25 = sbr.rel (0) target = $region9
    $region8: #{tpu_custom_call.1} parent=1 // pred_region
      _
    $region9: #{tpu_custom_call.1} parent=1 // pred_fallthru
      _
    // Predicated region
    $region10: #{tpu_custom_call.1} parent=1 // pred_check
      _
    $region11: #{tpu_custom_call.1} parent=1 // pred_check_branch
      %27 = sbr.rel (0) target = $region13
    $region12: #{tpu_custom_call.1} parent=1 // pred_region
      _
    $region13: #{tpu_custom_call.1} parent=1 // pred_fallthru
      _
    // Predicated region
    $region14: #{tpu_custom_call.1} parent=1 // pred_check
      _
    $region15: #{tpu_custom_call.1} parent=1 // pred_check_branch
      %29 = sbr.rel (0) target = $region17
    $region16: #{tpu_custom_call.1} parent=1 // pred_region
      %s31 = ssub.s32 256, 256
      %32 = vsyncadd [#allocation6], %s31
      %s33 = sshll.u32 [#allocation5], 4
      %s34 = int_to_ptr.vmem [resolvable:$true] %s33
      %39 = dma.hbm_to_vmem [thread:$0]  %s3, 256, %s34, [#allocation6], 64, 64, 4
    $region17: #{tpu_custom_call.1} parent=1 // pred_fallthru
      _
    // Predicated region
    $region18: #{tpu_custom_call.1} parent=1 // pred_check
      _
    $region19: #{tpu_custom_call.1} parent=1 // pred_check_branch
      %41 = sbr.rel (0) target = $region21
    $region20: #{tpu_custom_call.1} parent=1 // pred_region
      _
    $region21: #{tpu_custom_call.1} parent=1 // pred_fallthru
      _
    // Predicated region
    $region22: #{tpu_custom_call.1} parent=1 // pred_check
      _
    $region23: #{tpu_custom_call.1} parent=1 // pred_check_branch
      %43 = sbr.rel (0) target = $region25
    $region24: #{tpu_custom_call.1} parent=1 // pred_region
      _
    $region25: #{tpu_custom_call.1} parent=1 // pred_fallthru
      _
    // Predicated region
    $region26: #{tpu_custom_call.1} parent=1 // pred_check
      _
    $region27: #{tpu_custom_call.1} parent=1 // pred_check_branch
      %45 = sbr.rel (0) target = $region29
    $region28: #{tpu_custom_call.1} parent=1 // pred_region
      %46 = dma.done [#allocation3], 128
    $region29: #{tpu_custom_call.1} parent=1 // pred_fallthru
      _
    // Predicated region
    $region30: #{tpu_custom_call.1} parent=1 // pred_check
      _
    $region31: #{tpu_custom_call.1} parent=1 // pred_check_branch
      %48 = sbr.rel (0) target = $region33
    $region32: #{tpu_custom_call.1} parent=1 // pred_region
      %49 = dma.done [#allocation6], 256
    $region33: #{tpu_custom_call.1} parent=1 // pred_fallthru
      _
    %v51 = vld [vmem:[#allocation2] sm:$0xff]
    %vm52 = vcmask 261120
    %v53 = vsel %vm52, %v51, 0.0
    %54 = vadd.xlane.f32.xlu0 %v53
    %v55 = vpop.xlane.xlu0 %54
    %v56 = vrcp.pop 32.0
    %v57 = vmul.f32 %v55, %v56
    %v58 = vsub.f32 %v51, %v57
    %v59 = vmul.f32 %v58, %v58
    %v60 = vsel %vm52, %v59, 0.0
    %61 = vadd.xlane.f32.xlu0 %v60
    %v62 = vpop.xlane.xlu0 %61
    %v63 = vmul.f32 %v62, %v56
    %v64 = vadd.f32 %v63, 1e-05
    %v65 = vrsqrt.pop %v64
    %v66 = vmul.f32 %v58, %v65
    %v67 = vld [vmem:[%s1] sm:$0x1]
    %v69 = vlaneseq
    %v70 = vshrl.u32 %v69, 7
    %v71 = vsub.s32 0, %v70
    %v72 = vrot.slane %v67, %v71
    %v74 = vmul.f32 %v66, %v72
    %v75 = vld [vmem:[%s2] sm:$0x1]
    %v77 = vlaneseq
    %v78 = vshrl.u32 %v77, 7
    %v79 = vsub.s32 0, %v78
    %v80 = vrot.slane %v75, %v79
    %v82 = vadd.f32 %v74, %v80
    %v83 = vpack.c.bf16 %v82, %v82
    %v84 = vld [vmem:[#allocation5] sm:$0xf]
    %v85 = vld [vmem:[#allocation5 + $0x4] sm:$0xf]
    %v86 = vld [vmem:[#allocation5 + $0x8] sm:$0xf]
    %v87 = vld [vmem:[#allocation5 + $0xc] sm:$0xf]
    %v92 = vunpack.c.l.b16 %v84
    %v93 = vunpack.c.l.b16 %v85
    %v94 = vunpack.c.l.b16 %v86
    %v95 = vunpack.c.l.b16 %v87
    %v96 = vpack.c.b16 %v93, %v92
    %v97 = vpack.c.b16 %v95, %v94
    %v101 = vsel %vm52, %v83, 0
    %103 = vmatprep.subr.bf16.mxu0 0
    %104 = vmatpush1.bf16.msra.mxu0 %v96
    %105 = vmatprep.subr.bf16.mxu0 0
    %106 = vmatpush1.bf16.msra.mxu0 %v97
    %107 = vmatprep.subr.bf16.mxu0 0
    %108 = vmatpush1.bf16.msra.mxu0 0
    %109 = vmatprep.subr.bf16.mxu0 0
    %110 = vmatpush1.bf16.msra.mxu0 0
    %111 = vmatprep.subr.bf16.mxu0 0
    %112 = vmatpush1.bf16.msra.mxu0 0
    %113 = vmatprep.subr.bf16.mxu0 0
    %114 = vmatpush1.bf16.msra.mxu0 0
    %115 = vmatprep.subr.bf16.mxu0 0
    %116 = vmatpush1.bf16.msra.mxu0 0
    %117 = vmatprep.subr.bf16.mxu0 0
    %118 = vmatpush1.bf16.msra.mxu0 0
    %119 = vmatprep.subr.bf16.mxu0 0
    %120 = vmatpush1.bf16.msra.mxu0 0
    %121 = vmatprep.subr.bf16.mxu0 0
    %122 = vmatpush1.bf16.msra.mxu0 0
    %123 = vmatprep.subr.bf16.mxu0 0
    %124 = vmatpush1.bf16.msra.mxu0 0
    %125 = vmatprep.subr.bf16.mxu0 0
    %126 = vmatpush1.bf16.msra.mxu0 0
    %127 = vmatprep.subr.bf16.mxu0 0
    %128 = vmatpush1.bf16.msra.mxu0 0
    %129 = vmatprep.subr.bf16.mxu0 0
    %130 = vmatpush1.bf16.msra.mxu0 0
    %131 = vmatprep.subr.bf16.mxu0 0
    %132 = vmatpush1.bf16.msra.mxu0 0
    %133 = vmatprep.subr.bf16.mxu0 0
    %134 = vmatpush1.bf16.msra.mxu0 0
    %135 = vmatprep.mubr.bf16.mxu0 0
    %136 = vmatmul.mubr.bf16.gmra.mrb[0].mxu0 %v101
    %v137 = vpop.f32.mrb[0].mxu0
    %v138 = vadd.f32 0.0, %v137
    %v139 = vpop.f32.mrb[0].mxu0
    %v140 = vpop.f32.mrb[0].mxu0
    %v141 = vpop.f32.mrb[0].mxu0
    %142 = vdwg.mxu0
    %v143 = vld [vmem:[%s4] sm:$0xff]
    %v144 = vmul.f32 %v138, %v143
    %v145 = vsub.f32 0.0, %v138
    %147 = vrot.lane.b32.xlu0 %v145, 124
    %v148 = vpop.permute.xlu0 %147
    %151 = vrot.lane.b32.xlu0 %v138, 4
    %v152 = vpop.permute.xlu0 %151
    %vm154 = vcmask 31744
    %v155 = vsel %vm154, %v148, %v152
    %156 = vrot.lane.b32.xlu0 %v145, 116
    %v157 = vpop.permute.xlu0 %156
    %159 = vrot.lane.b32.xlu0 %v138, 124
    %v160 = vpop.permute.xlu0 %159
    %v162 = vsel %vm154, %v157, %v160
    %163 = vrot.lane.b32.xlu0 %v145, 108
    %v164 = vpop.permute.xlu0 %163
    %166 = vrot.lane.b32.xlu0 %v138, 116
    %v167 = vpop.permute.xlu0 %166
    %v169 = vsel %vm154, %v164, %v167
    %170 = vrot.lane.b32.xlu0 %v145, 100
    %v171 = vpop.permute.xlu0 %170
    %173 = vrot.lane.b32.xlu0 %v138, 108
    %v174 = vpop.permute.xlu0 %173
    %v176 = vsel %vm154, %v171, %v174
    %178 = vrot.lane.b32.xlu0 %v162, 8
    %v179 = vpop.permute.xlu0 %178
    %182 = vrot.lane.b32.xlu0 %v169, 16
    %v183 = vpop.permute.xlu0 %182
    %186 = vrot.lane.b32.xlu0 %v176, 24
    %v187 = vpop.permute.xlu0 %186
    %vm189 = vcmask 64512
    %v190 = vsel %vm189, %v155, %v179
    %vm191 = vcmask 130048
    %v192 = vsel %vm191, %v190, %v183
    %vm193 = vcmask 195584
    %v194 = vsel %vm193, %v192, %v187
    %v195 = vld [vmem:[%s5] sm:$0xff]
    %v196 = vmul.f32 %v194, %v195
    %v197 = vadd.f32 %v144, %v196
    %198 = vst.msk [vmem:[#allocation7] sm:$0xff] %vm52, %v197
    // Predicated region
    $region34: #{tpu_custom_call.1} parent=1 // pred_check
      _
    $region35: #{tpu_custom_call.1} parent=1 // pred_check_branch
      %200 = sbr.rel (0) target = $region37
    $region36: #{tpu_custom_call.1} parent=1 // pred_region
      %s202 = ssub.s32 128, 128
      %203 = vsyncadd [#allocation4], %s202
      %s205 = sshll.u32 [#allocation7], 4
      %s206 = int_to_ptr.vmem [resolvable:$true] %s205
      %208 = dma.vmem_to_hbm [thread:$0]  %s206, 128, %s6, [#allocation4]
    $region37: #{tpu_custom_call.1} parent=1 // pred_fallthru
      _
    // Predicated region
    $region38: #{tpu_custom_call.1} parent=1 // pred_check
      _
    $region39: #{tpu_custom_call.1} parent=1 // pred_check_branch
      %210 = sbr.rel (0) target = $region41
    $region40: #{tpu_custom_call.1} parent=1 // pred_region
      %211 = dma.done [#allocation4], 128
    $region41: #{tpu_custom_call.1} parent=1 // pred_fallthru
      _
    %212 = vsyncpa [#allocation3], 1
    %213 = vsyncpa [#allocation6], 1
    %214 = vsyncpa [#allocation4], 1

</llo_original>
